<compile_context>
chip_gen: v7x
topology: tpu7x:2x2x1
jax: 0.10.0
libtpu: 0.0.40
codegen_flags: <defaults>
</compile_context>

<pallas_src>
import functools
import math

import jax
import jax.numpy as jnp
from jax import lax
from jax.experimental import pallas as pl
from jax.experimental.pallas import tpu as pltpu

LN_EPS = 1e-5  # PyTorch nn.LayerNorm default


# ----------------------------------------------------------------------------
# Tiling / VMEM helpers
# ----------------------------------------------------------------------------
def _largest_mult8_divisor(n, target):
    best = 0
    t = 8
    while t <= min(target, n):
        if n % t == 0:
            best = t
        t += 8
    return best


def _row_tiling(m, target=512):
    """Return (row_tile, padded_rows). Pads instead of degenerating to tiny tiles."""
    if m <= target:
        return m, m                       # single block equal to the full dim
    t = _largest_mult8_divisor(m, target)
    if t >= 128:
        return t, m                       # clean divisor, no padding
    tile = target
    return tile, ((m + tile - 1) // tile) * tile


def _pad_rows(x2d, padded_m):
    m = x2d.shape[0]
    if padded_m == m:
        return x2d
    return jnp.pad(x2d, ((0, padded_m - m), (0, 0)))


def _q_tile(s, target=256):
    if s <= target:
        return s
    t = _largest_mult8_divisor(s, target)
    # TODO(synk): pad + mask the query rows when S has no friendly divisor.
    return t if t >= 64 else s


def _f_tile(f, target=2048):
    if f <= target:
        return f
    t = _largest_mult8_divisor(f, target)
    return t if t >= 512 else f


def _vmem_limit(entries):
    """entries: iterable of (shape, dtype). Assumes double-buffering everywhere."""
    total = 0
    for shape, dtype in entries:
        total += 2 * int(math.prod(shape)) * jnp.dtype(dtype).itemsize
    total = int(total * 1.25) + (4 << 20)
    return int(min(max(total, 32 << 20), 96 << 20))


# ----------------------------------------------------------------------------
# Kernel 1: row-tiled LayerNorm (only used when there are zero layers)
# ----------------------------------------------------------------------------
def _layernorm_kernel(x_ref, g_ref, b_ref, o_ref, *, eps):
    x = x_ref[...].astype(jnp.float32)
    mu = jnp.mean(x, axis=-1, keepdims=True)
    xc = x - mu
    var = jnp.mean(xc * xc, axis=-1, keepdims=True)
    o_ref[...] = (xc * lax.rsqrt(var + eps) * g_ref[...] + b_ref[...]).astype(o_ref.dtype)


def layernorm(x2d, gamma, beta, *, eps=LN_EPS):
    m, e = x2d.shape
    tm, mp = _row_tiling(m)
    xp = _pad_rows(x2d, mp)
    vmem = _vmem_limit([((tm, e), x2d.dtype), ((tm, e), x2d.dtype)])
    out = pl.pallas_call(
        functools.partial(_layernorm_kernel, eps=eps),
        out_shape=jax.ShapeDtypeStruct((mp, e), x2d.dtype),
        grid_spec=pltpu.PrefetchScalarGridSpec(
            num_scalar_prefetch=0,
            grid=(mp // tm,),
            in_specs=[
                pl.BlockSpec((tm, e), lambda i: (i, 0)),
                pl.BlockSpec((1, e), lambda i: (0, 0)),
                pl.BlockSpec((1, e), lambda i: (0, 0)),
            ],
            out_specs=pl.BlockSpec((tm, e), lambda i: (i, 0)),
        ),
        compiler_params=pltpu.CompilerParams(
            dimension_semantics=("parallel",), vmem_limit_bytes=vmem),
        cost_estimate=pl.CostEstimate(
            flops=10 * mp * e, transcendentals=mp,
            bytes_accessed=int((2 * mp * e + 2 * e) * 4)),
    )(xp, gamma.reshape(1, e), beta.reshape(1, e))
    return out[:m]


# ----------------------------------------------------------------------------
# Kernel 2: fused LayerNorm + QKV projection
#   q, k, v = split(LN(x) @ Wqkv_t)  with Wqkv_t = concat([Wq,Wk,Wv],0).T (E,3E)
#   (three separate outputs -> downstream BlockSpecs keep full-E last dims)
# ----------------------------------------------------------------------------
def _ln_qkv_kernel(x_ref, g_ref, b_ref, w_ref, oq_ref, ok_ref, ov_ref, *, eps):
    x = x_ref[...].astype(jnp.float32)                       # (tm, E)
    mu = jnp.mean(x, axis=-1, keepdims=True)
    xc = x - mu
    var = jnp.mean(xc * xc, axis=-1, keepdims=True)
    h = xc * lax.rsqrt(var + eps) * g_ref[...] + b_ref[...]
    res = jnp.dot(h.astype(w_ref.dtype), w_ref[...],
                  preferred_element_type=jnp.float32)         # (tm, 3E), f32 acc
    e = oq_ref.shape[-1]
    oq_ref[...] = res[:, 0:e].astype(oq_ref.dtype)
    ok_ref[...] = res[:, e:2 * e].astype(ok_ref.dtype)
    ov_ref[...] = res[:, 2 * e:3 * e].astype(ov_ref.dtype)


def ln_qkv_proj(x2d, gamma, beta, wqkv_t, *, eps=LN_EPS, out_dtype=None):
    m, e = x2d.shape
    n_out = wqkv_t.shape[1]
    out_dtype = out_dtype or wqkv_t.dtype
    tm, mp = _row_tiling(m)
    xp = _pad_rows(x2d, mp)
    vmem = _vmem_limit([
        ((tm, e), x2d.dtype), ((e, n_out), wqkv_t.dtype),
        ((tm, n_out), jnp.float32),
        ((tm, e), out_dtype), ((tm, e), out_dtype), ((tm, e), out_dtype),
    ])
    q2d, k2d, v2d = pl.pallas_call(
        functools.partial(_ln_qkv_kernel, eps=eps),
        out_shape=tuple(jax.ShapeDtypeStruct((mp, e), out_dtype) for _ in range(3)),
        grid_spec=pltpu.PrefetchScalarGridSpec(
            num_scalar_prefetch=0,
            grid=(mp // tm,),
            in_specs=[
                pl.BlockSpec((tm, e), lambda i: (i, 0)),
                pl.BlockSpec((1, e), lambda i: (0, 0)),
                pl.BlockSpec((1, e), lambda i: (0, 0)),
                # TODO(synk): N/K-tile this resident weight for very large E.
                pl.BlockSpec((e, n_out), lambda i: (0, 0)),
            ],
            out_specs=tuple(pl.BlockSpec((tm, e), lambda i: (i, 0)) for _ in range(3)),
        ),
        compiler_params=pltpu.CompilerParams(
            dimension_semantics=("parallel",), vmem_limit_bytes=vmem),
        cost_estimate=pl.CostEstimate(
            flops=2 * mp * e * n_out + 10 * mp * e,
            transcendentals=mp,
            bytes_accessed=int(mp * e * 4 + e * n_out * 2 + 3 * mp * e * 2 + 2 * e * 4)),
    )(xp, gamma.reshape(1, e), beta.reshape(1, e), wqkv_t)
    return q2d[:m], k2d[:m], v2d[:m]


# ----------------------------------------------------------------------------
# Kernel 3: q-row-tiled multi-head attention + fc_out + residual
#   grid = (N, S // tq); K/V blocks are invariant across the q axis.
# ----------------------------------------------------------------------------
def _mha_outproj_kernel(q_ref, k_ref, v_ref, res_ref, wo_ref, bo_ref, o_ref,
                        ctx_ref, *, heads, scale):
    e = q_ref.shape[-1]
    hd = e // heads
    mxu_dtype = wo_ref.dtype
    q = (q_ref[0].astype(jnp.float32) * scale).astype(mxu_dtype)   # (tq, E)
    k = k_ref[0]                                                   # (S,  E)
    v = v_ref[0]
    # TODO(synk): when hd is not a multiple of 128, move the head split into a
    #             BlockSpec grid axis to avoid in-vreg relayouts.
    for h in range(heads):                        # static unroll over heads
        lo = h * hd
        qh = q[:, lo:lo + hd]
        kh = k[:, lo:lo + hd]
        vh = v[:, lo:lo + hd]
        s = lax.dot_general(qh, kh, (((1,), (1,)), ((), ())),
                            preferred_element_type=jnp.float32)    # (tq, S)
        m = jnp.max(s, axis=-1, keepdims=True)
        p = jnp.exp(s - m)
        denom = jnp.sum(p, axis=-1, keepdims=True)
        r = pl.reciprocal(denom, approx=True)
        r = r * (2.0 - denom * r)                 # one Newton step -> ~exact
        p = (p * r).astype(mxu_dtype)
        # write each head's context directly into the scratch (no concatenate)
        ctx_ref[:, lo:lo + hd] = jnp.dot(p, vh, preferred_element_type=jnp.float32)
    out = jnp.dot(ctx_ref[...].astype(mxu_dtype), wo_ref[...],
                  preferred_element_type=jnp.float32) + bo_ref[...]
    o_ref[0] = (out + res_ref[0].astype(jnp.float32)).astype(o_ref.dtype)


def mha_outproj(q3, k3, v3, res3, wo_t, bo, *, heads):
    n, s, e = q3.shape
    hd = e // heads
    scale = 1.0 / math.sqrt(hd)
    tq = _q_tile(s)
    vmem = _vmem_limit([
        ((tq, e), q3.dtype), ((s, e), k3.dtype), ((s, e), v3.dtype),
        ((tq, e), res3.dtype), ((e, e), wo_t.dtype), ((tq, e), res3.dtype),
        ((tq, e), jnp.float32),        # ctx scratch
        ((tq, s), jnp.float32),        # live score slab
    ])
    return pl.pallas_call(
        functools.partial(_mha_outproj_kernel, heads=heads, scale=scale),
        out_shape=jax.ShapeDtypeStruct((n, s, e), res3.dtype),
        grid_spec=pltpu.PrefetchScalarGridSpec(
            num_scalar_prefetch=0,
            grid=(n, s // tq),
            in_specs=[
                pl.BlockSpec((1, tq, e), lambda b, qi: (b, qi, 0)),   # q tile
                pl.BlockSpec((1, s, e), lambda b, qi: (b, 0, 0)),     # K (full)
                pl.BlockSpec((1, s, e), lambda b, qi: (b, 0, 0)),     # V (full)
                pl.BlockSpec((1, tq, e), lambda b, qi: (b, qi, 0)),   # residual
                pl.BlockSpec((e, e), lambda b, qi: (0, 0)),           # Wo
                pl.BlockSpec((1, e), lambda b, qi: (0, 0)),           # b_fc
            ],
            out_specs=pl.BlockSpec((1, tq, e), lambda b, qi: (b, qi, 0)),
            scratch_shapes=[pltpu.VMEM((tq, e), jnp.float32)],
        ),
        compiler_params=pltpu.CompilerParams(
            dimension_semantics=("parallel", "parallel"), vmem_limit_bytes=vmem),
        cost_estimate=pl.CostEstimate(
            flops=n * (4 * s * s * e + 2 * s * e * e),
            transcendentals=n * s * s,
            bytes_accessed=int(n * s * e * (3 * 2 + 2 * 4) + e * e * 2 + e * 4)),
    )(q3, k3, v3, res3, wo_t, bo.reshape(1, e))


# ----------------------------------------------------------------------------
# Kernel 4: fused LayerNorm + FFN (Linear -> GELU -> Linear) + residual
#   F (hidden) dimension is a reduction grid axis (last) with an f32 VMEM
#   accumulator; optional final-LayerNorm epilogue for the last layer.
# ----------------------------------------------------------------------------
def _ln_ffn_kernel(x_ref, g_ref, b_ref, w1_ref, b1_ref, w2_ref, b2_ref, *rest,
                   eps, final_ln):
    if final_ln:
        gf_ref, bf_ref, o_ref, h_sc, acc_sc = rest
    else:
        o_ref, h_sc, acc_sc = rest
    f = pl.program_id(1)

    @pl.when(f == 0)
    def _():
        x = x_ref[...].astype(jnp.float32)
        mu = jnp.mean(x, axis=-1, keepdims=True)
        xc = x - mu
        var = jnp.mean(xc * xc, axis=-1, keepdims=True)
        h_sc[...] = xc * lax.rsqrt(var + eps) * g_ref[...] + b_ref[...]
        acc_sc[...] = jnp.zeros_like(acc_sc)

    mxu_dtype = w1_ref.dtype
    h1 = jnp.dot(h_sc[...].astype(mxu_dtype), w1_ref[...],
                 preferred_element_type=jnp.float32) + b1_ref[...]
    # TODO(synk): PyTorch nn.GELU() defaults to exact erf; tanh approx used here.
    h1 = jax.nn.gelu(h1, approximate=True)
    acc_sc[...] += jnp.dot(h1.astype(mxu_dtype), w2_ref[...],
                           preferred_element_type=jnp.float32)

    @pl.when(f == pl.num_programs(1) - 1)
    def _():
        y = x_ref[...].astype(jnp.float32) + acc_sc[...] + b2_ref[...]
        if final_ln:                      # fused final encoder LayerNorm
            mu = jnp.mean(y, axis=-1, keepdims=True)
            yc = y - mu
            var = jnp.mean(yc * yc, axis=-1, keepdims=True)
            y = yc * lax.rsqrt(var + eps) * gf_ref[...] + bf_ref[...]
        o_ref[...] = y.astype(o_ref.dtype)


def ln_ffn_residual(x2d, gamma, beta, w1_t, b1, w2_t, b2, *, eps=LN_EPS,
                    final_gamma=None, final_beta=None):
    m, e = x2d.shape
    ff = w1_t.shape[1]
    final_ln = final_gamma is not None
    tm, mp = _row_tiling(m)
    tf = _f_tile(ff)
    xp = _pad_rows(x2d, mp)

    in_specs = [
        pl.BlockSpec((tm, e), lambda i, f: (i, 0)),
        pl.BlockSpec((1, e), lambda i, f: (0, 0)),
        pl.BlockSpec((1, e), lambda i, f: (0, 0)),
        pl.BlockSpec((e, tf), lambda i, f: (0, f)),     # W1 tile (streamed over F)
        pl.BlockSpec((1, tf), lambda i, f: (0, f)),
        pl.BlockSpec((tf, e), lambda i, f: (f, 0)),     # W2 tile (streamed over F)
        pl.BlockSpec((1, e), lambda i, f: (0, 0)),
    ]
    args = [xp, gamma.reshape(1, e), beta.reshape(1, e), w1_t,
            b1.reshape(1, ff), w2_t, b2.reshape(1, e)]
    if final_ln:
        in_specs += [pl.BlockSpec((1, e), lambda i, f: (0, 0)),
                     pl.BlockSpec((1, e), lambda i, f: (0, 0))]
        args += [final_gamma.reshape(1, e), final_beta.reshape(1, e)]

    vmem = _vmem_limit([
        ((tm, e), x2d.dtype), ((e, tf), w1_t.dtype), ((tf, e), w2_t.dtype),
        ((tm, tf), jnp.float32),                          # h1 intermediate
        ((tm, e), jnp.float32), ((tm, e), jnp.float32),   # scratches
        ((tm, e), x2d.dtype),                             # output
    ])
    out = pl.pallas_call(
        functools.partial(_ln_ffn_kernel, eps=eps, final_ln=final_ln),
        out_shape=jax.ShapeDtypeStruct((mp, e), x2d.dtype),
        grid_spec=pltpu.PrefetchScalarGridSpec(
            num_scalar_prefetch=0,
            grid=(mp // tm, ff // tf),                    # reduction axis last
            in_specs=in_specs,
            out_specs=pl.BlockSpec((tm, e), lambda i, f: (i, 0)),
            scratch_shapes=[pltpu.VMEM((tm, e), jnp.float32),   # LN(x)
                            pltpu.VMEM((tm, e), jnp.float32)],  # accumulator
        ),
        compiler_params=pltpu.CompilerParams(
            dimension_semantics=("parallel", "arbitrary"), vmem_limit_bytes=vmem),
        cost_estimate=pl.CostEstimate(
            flops=4 * mp * e * ff + 20 * mp * e,
            transcendentals=mp * (ff + 1),
            bytes_accessed=int(2 * mp * e * 4 + 2 * e * ff * 2 + ff * 4 + 3 * e * 4)),
    )(*args)
    return out[:m]


# ----------------------------------------------------------------------------
# Parameter construction (mirrors the PyTorch init; weights pre-transposed /
# pre-concatenated ONCE and stored in bf16, everything else f32)
# ----------------------------------------------------------------------------
def _xavier_uniform(key, shape, dtype=jnp.float32):
    fan_out, fan_in = shape                                  # torch Linear: (out, in)
    bound = math.sqrt(6.0 / (fan_in + fan_out))
    return jax.random.uniform(key, shape, dtype, minval=-bound, maxval=bound)


def init_encoder_params(key, *, vocab_size, embed_size, num_layers, heads,
                        fw_expansion, max_len, param_dtype=jnp.bfloat16):
    e = embed_size
    f = fw_expansion * e
    keys = jax.random.split(key, 2 + 6 * num_layers)
    params = {
        "token_emb": 0.02 * jax.random.normal(keys[0], (vocab_size, e), jnp.float32),
        "pos_emb": 0.02 * jax.random.normal(keys[1], (max_len, e), jnp.float32),
        "layers": [],
        "ln_f_g": jnp.ones((e,), jnp.float32),
        "ln_f_b": jnp.zeros((e,), jnp.float32),
    }
    for layer in range(num_layers):
        k = keys[2 + 6 * layer: 2 + 6 * (layer + 1)]
        wq = _xavier_uniform(k[0], (e, e))
        wk = _xavier_uniform(k[1], (e, e))
        wv = _xavier_uniform(k[2], (e, e))
        wfc = _xavier_uniform(k[3], (e, e))
        w1 = _xavier_uniform(k[4], (f, e))
        w2 = _xavier_uniform(k[5], (e, f))
        params["layers"].append({
            "ln1_g": jnp.ones((e,), jnp.float32),
            "ln1_b": jnp.zeros((e,), jnp.float32),
            "wqkv_t": jnp.concatenate([wq, wk, wv], axis=0).T.astype(param_dtype),
            "wfc_t": wfc.T.astype(param_dtype),
            "b_fc": jnp.zeros((e,), jnp.float32),
            "ln2_g": jnp.ones((e,), jnp.float32),
            "ln2_b": jnp.zeros((e,), jnp.float32),
            "w1_t": w1.T.astype(param_dtype),
            "b1": jnp.zeros((f,), jnp.float32),
            "w2_t": w2.T.astype(param_dtype),
            "b2": jnp.zeros((e,), jnp.float32),
        })
    return params


# ----------------------------------------------------------------------------
# Full Encoder forward
# ----------------------------------------------------------------------------
def encoder_forward(params, token_ids, *, heads):
    n, s = token_ids.shape
    e = params["token_emb"].shape[1]
    # TODO(synk): the embedding gather stays in plain JAX; a Pallas row-gather
    #             (pl.Element index_map) is not worthwhile at these sizes.
    x = jnp.take(params["token_emb"], token_ids, axis=0) + params["pos_emb"][:s][None]
    layers = params["layers"]
    if not layers:
        return layernorm(x.reshape(n * s, e),
                         params["ln_f_g"], params["ln_f_b"]).reshape(n, s, e)
    for li, lp in enumerate(layers):
        q2d, k2d, v2d = ln_qkv_proj(x.reshape(n * s, e), lp["ln1_g"], lp["ln1_b"],
                                    lp["wqkv_t"])
        x = mha_outproj(q2d.reshape(n, s, e), k2d.reshape(n, s, e),
                        v2d.reshape(n, s, e), x, lp["wfc_t"], lp["b_fc"],
                        heads=heads)
        last = li == len(layers) - 1
        x = ln_ffn_residual(
            x.reshape(n * s, e), lp["ln2_g"], lp["ln2_b"],
            lp["w1_t"], lp["b1"], lp["w2_t"], lp["b2"],
            final_gamma=params["ln_f_g"] if last else None,
            final_beta=params["ln_f_b"] if last else None,
        ).reshape(n, s, e)
    return x


# ----------------------------------------------------------------------------
# Pure-JAX reference (mirrors the PyTorch module; f32 math with the same
# bf16-stored weights; dropout = identity, mask = None)
# ----------------------------------------------------------------------------
def _ref_ln(x, g, b, eps=LN_EPS):
    mu = x.mean(-1, keepdims=True)
    var = ((x - mu) ** 2).mean(-1, keepdims=True)
    return (x - mu) / jnp.sqrt(var + eps) * g + b


def reference_forward(params, token_ids, heads):
    n, s = token_ids.shape
    e = params["token_emb"].shape[1]
    hd = e // heads
    x = jnp.take(params["token_emb"], token_ids, axis=0) + params["pos_emb"][:s][None]
    for lp in params["layers"]:
        res = x
        h = _ref_ln(x, lp["ln1_g"], lp["ln1_b"])
        qkv = h.reshape(n * s, e) @ lp["wqkv_t"]
        q, k, v = jnp.split(qkv, 3, axis=-1)
        sh = lambda t: t.reshape(n, s, heads, hd).transpose(0, 2, 1, 3)
        q, k, v = sh(q), sh(k), sh(v)
        energy = jnp.einsum("bhqd,bhkd->bhqk", q, k) / math.sqrt(hd)
        a = jax.nn.softmax(energy, axis=-1)
        o = jnp.einsum("bhqk,bhkd->bhqd", a, v)
        o = o.transpose(0, 2, 1, 3).reshape(n, s, e) @ lp["wfc_t"] + lp["b_fc"]
        x = res + o
        res = x
        h = _ref_ln(x, lp["ln2_g"], lp["ln2_b"])
        h1 = jax.nn.gelu(h.reshape(n * s, e) @ lp["w1_t"] + lp["b1"], approximate=True)
        x = res + (h1 @ lp["w2_t"] + lp["b2"]).reshape(n, s, e)
    return _ref_ln(x, params["ln_f_g"], params["ln_f_b"])


if __name__ == "__main__":
    vocab_size, embed_size, num_layers, heads = 50, 32, 2, 4
    fw_expansion, max_len = 4, 16
    batch, seq = 2, 8

    key = jax.random.PRNGKey(0)
    kp, kx = jax.random.split(key)
    params = init_encoder_params(kp, vocab_size=vocab_size, embed_size=embed_size,
                                 num_layers=num_layers, heads=heads,
                                 fw_expansion=fw_expansion, max_len=max_len)
    token_ids = jax.random.randint(kx, (batch, seq), 0, vocab_size, dtype=jnp.int32)

    out = jax.block_until_ready(encoder_forward(params, token_ids, heads=heads))
    ref = reference_forward(params, token_ids, heads)

    assert out.shape == (batch, seq, embed_size)
    assert bool(jnp.all(jnp.isfinite(out)))
    # tolerance accounts for bf16 matmul operands (f32 accumulation) in the kernels
    max_err = float(jnp.max(jnp.abs(out - ref)))
    assert jnp.allclose(out, ref, atol=5e-2, rtol=5e-2), max_err

    print("KERNEL_OK")
</pallas_src>

<mosaic_0001>
module attributes {stable_mosaic.version = 11 : i64} {
  func.func @_ln_qkv_kernel(%arg0: i32, %arg1: memref<16x32xf32, #tpu.memory_space<vmem>>, %arg2: memref<1x32xf32, #tpu.memory_space<vmem>>, %arg3: memref<1x32xf32, #tpu.memory_space<vmem>>, %arg4: memref<32x96xbf16, #tpu.memory_space<vmem>>, %arg5: memref<16x32xbf16, #tpu.memory_space<vmem>>, %arg6: memref<16x32xbf16, #tpu.memory_space<vmem>>, %arg7: memref<16x32xbf16, #tpu.memory_space<vmem>>) attributes {dimension_semantics = [#tpu.dimension_semantics<parallel>], iteration_bounds = array<i64: 1>, scalar_prefetch = 0 : i64, scratch_operands = 0 : i64, tpu.core_type = #tpu.core_type<tc>, window_params = [{transform_indices = @transform_0, window_bounds = array<i64: 16, 32>}, {pipeline_mode = #tpu.pipeline_mode<synchronous>, transform_indices = @transform_1, window_bounds = array<i64: 1, 32>}, {pipeline_mode = #tpu.pipeline_mode<synchronous>, transform_indices = @transform_2, window_bounds = array<i64: 1, 32>}, {pipeline_mode = #tpu.pipeline_mode<synchronous>, transform_indices = @transform_3, window_bounds = array<i64: 32, 96>}, {transform_indices = @transform_4, window_bounds = array<i64: 16, 32>}, {transform_indices = @transform_5, window_bounds = array<i64: 16, 32>}, {transform_indices = @transform_6, window_bounds = array<i64: 16, 32>}]} {
    %c0 = arith.constant 0 : index
    %c0_0 = arith.constant 0 : index
    %0 = vector.load %arg1[%c0, %c0_0] : memref<16x32xf32, #tpu.memory_space<vmem>>, vector<16x32xf32>
    %cst = arith.constant dense<0.000000e+00> : vector<16xf32>
    %1 = vector.multi_reduction <add>, %0, %cst [1] : vector<16x32xf32> to vector<16xf32>
    %2 = vector.shape_cast %1 : vector<16xf32> to vector<16x1xf32>
    %cst_1 = arith.constant 3.200000e+01 : f32
    %3 = vector.broadcast %cst_1 : f32 to vector<16x1xf32>
    %4 = arith.divf %2, %3 : vector<16x1xf32>
    %5 = vector.broadcast %4 : vector<16x1xf32> to vector<16x32xf32>
    %6 = arith.subf %0, %5 : vector<16x32xf32>
    %7 = arith.mulf %6, %6 : vector<16x32xf32>
    %cst_2 = arith.constant dense<0.000000e+00> : vector<16xf32>
    %8 = vector.multi_reduction <add>, %7, %cst_2 [1] : vector<16x32xf32> to vector<16xf32>
    %9 = vector.shape_cast %8 : vector<16xf32> to vector<16x1xf32>
    %cst_3 = arith.constant 3.200000e+01 : f32
    %10 = vector.broadcast %cst_3 : f32 to vector<16x1xf32>
    %11 = arith.divf %9, %10 : vector<16x1xf32>
    %cst_4 = arith.constant 9.99999974E-6 : f32
    %12 = vector.broadcast %cst_4 : f32 to vector<16x1xf32>
    %13 = arith.addf %11, %12 : vector<16x1xf32>
    %14 = math.rsqrt %13 : vector<16x1xf32>
    %15 = vector.broadcast %14 : vector<16x1xf32> to vector<16x32xf32>
    %16 = arith.mulf %6, %15 : vector<16x32xf32>
    %c0_5 = arith.constant 0 : index
    %c0_6 = arith.constant 0 : index
    %17 = vector.load %arg2[%c0_5, %c0_6] : memref<1x32xf32, #tpu.memory_space<vmem>>, vector<1x32xf32>
    %18 = vector.broadcast %17 : vector<1x32xf32> to vector<16x32xf32>
    %19 = arith.mulf %16, %18 : vector<16x32xf32>
    %c0_7 = arith.constant 0 : index
    %c0_8 = arith.constant 0 : index
    %20 = vector.load %arg3[%c0_7, %c0_8] : memref<1x32xf32, #tpu.memory_space<vmem>>, vector<1x32xf32>
    %21 = vector.broadcast %20 : vector<1x32xf32> to vector<16x32xf32>
    %22 = arith.addf %19, %21 : vector<16x32xf32>
    %23 = arith.truncf %22 : vector<16x32xf32> to vector<16x32xbf16>
    %c0_9 = arith.constant 0 : index
    %c0_10 = arith.constant 0 : index
    %24 = vector.load %arg4[%c0_9, %c0_10] : memref<32x96xbf16, #tpu.memory_space<vmem>>, vector<32x96xbf16>
    %cst_11 = arith.constant dense<0.000000e+00> : vector<16x96xf32>
    %25 = tpu.matmul %23, %24, %cst_11 {dimension_numbers = #tpu.dot_dimension_numbers<[1], [0], [0], [1], [0, 0, 1, 1], [], []>} : vector<16x32xbf16>, vector<32x96xbf16>, vector<16x96xf32> -> vector<16x96xf32>
    %26 = vector.extract_strided_slice %25 {offsets = [0, 0], sizes = [16, 32], strides = [1, 1]} : vector<16x96xf32> to vector<16x32xf32>
    %27 = arith.truncf %26 : vector<16x32xf32> to vector<16x32xbf16>
    %c0_12 = arith.constant 0 : index
    %c0_13 = arith.constant 0 : index
    %28 = vector.load %arg5[%c0_12, %c0_13] : memref<16x32xbf16, #tpu.memory_space<vmem>>, vector<16x32xbf16>
    tpu.vector_store %arg5[%c0_12, %c0_13], %27 {strides = array<i32>} : memref<16x32xbf16, #tpu.memory_space<vmem>>, vector<16x32xbf16>,
    %29 = vector.extract_strided_slice %25 {offsets = [0, 32], sizes = [16, 32], strides = [1, 1]} : vector<16x96xf32> to vector<16x32xf32>
    %30 = arith.truncf %29 : vector<16x32xf32> to vector<16x32xbf16>
    %c0_14 = arith.constant 0 : index
    %c0_15 = arith.constant 0 : index
    %31 = vector.load %arg6[%c0_14, %c0_15] : memref<16x32xbf16, #tpu.memory_space<vmem>>, vector<16x32xbf16>
    tpu.vector_store %arg6[%c0_14, %c0_15], %30 {strides = array<i32>} : memref<16x32xbf16, #tpu.memory_space<vmem>>, vector<16x32xbf16>,
    %32 = vector.extract_strided_slice %25 {offsets = [0, 64], sizes = [16, 32], strides = [1, 1]} : vector<16x96xf32> to vector<16x32xf32>
    %33 = arith.truncf %32 : vector<16x32xf32> to vector<16x32xbf16>
    %c0_16 = arith.constant 0 : index
    %c0_17 = arith.constant 0 : index
    %34 = vector.load %arg7[%c0_16, %c0_17] : memref<16x32xbf16, #tpu.memory_space<vmem>>, vector<16x32xbf16>
    tpu.vector_store %arg7[%c0_16, %c0_17], %33 {strides = array<i32>} : memref<16x32xbf16, #tpu.memory_space<vmem>>, vector<16x32xbf16>,
    return
  }
  func.func @transform_0(%arg0: i32) -> (i32, i32) {
    %c0_i32 = arith.constant 0 : i32
    %c0_i32_0 = arith.constant 0 : i32
    return %arg0, %c0_i32 : i32, i32
  }
  func.func @transform_1(%arg0: i32) -> (i32, i32) {
    %c0_i32 = arith.constant 0 : i32
    %c0_i32_0 = arith.constant 0 : i32
    %c0_i32_1 = arith.constant 0 : i32
    return %c0_i32, %c0_i32_0 : i32, i32
  }
  func.func @transform_2(%arg0: i32) -> (i32, i32) {
    %c0_i32 = arith.constant 0 : i32
    %c0_i32_0 = arith.constant 0 : i32
    %c0_i32_1 = arith.constant 0 : i32
    return %c0_i32, %c0_i32_0 : i32, i32
  }
  func.func @transform_3(%arg0: i32) -> (i32, i32) {
    %c0_i32 = arith.constant 0 : i32
    %c0_i32_0 = arith.constant 0 : i32
    %c0_i32_1 = arith.constant 0 : i32
    return %c0_i32, %c0_i32_0 : i32, i32
  }
  func.func @transform_4(%arg0: i32) -> (i32, i32) {
    %c0_i32 = arith.constant 0 : i32
    %c0_i32_0 = arith.constant 0 : i32
    return %arg0, %c0_i32 : i32, i32
  }
  func.func @transform_5(%arg0: i32) -> (i32, i32) {
    %c0_i32 = arith.constant 0 : i32
    %c0_i32_0 = arith.constant 0 : i32
    return %arg0, %c0_i32 : i32, i32
  }
  func.func @transform_6(%arg0: i32) -> (i32, i32) {
    %c0_i32 = arith.constant 0 : i32
    %c0_i32_0 = arith.constant 0 : i32
    return %arg0, %c0_i32 : i32, i32
  }
}

</mosaic_0001>

<llo_original>
// kernel: tpu_custom_call.1
$region0: #{tpu_custom_call.1}
  #allocation0 [shape = 'u32[]', space=smem, size = 0x4, offset = 0x4, fixed_abs, tag = 'smem constant byte address 0x4 - core index']
  #allocation1 [shape = 'u32[144,128]{1,0:T(1,128)}', space=vmem, size = 0x12000, scoped, tag = 'internal scratch']
  %s0 = inlined_call_operand.hbm [shape: f32[16,32], index: 0, kind: input, shape index: {}]
  %s1 = inlined_call_operand.vmem [shape: f32[1,32], index: 1, kind: input, shape index: {}]
  %s2 = inlined_call_operand.vmem [shape: f32[1,32], index: 2, kind: input, shape index: {}]
  %s3 = inlined_call_operand.hbm [shape: bf16[32,96], index: 3, kind: input, shape index: {}]
  %s4 = inlined_call_operand.hbm [shape: bf16[16,32], index: 4, kind: output, shape index: {0}]
  %s5 = inlined_call_operand.hbm [shape: bf16[16,32], index: 5, kind: output, shape index: {1}]
  %s6 = inlined_call_operand.hbm [shape: bf16[16,32], index: 6, kind: output, shape index: {2}]
  %7 = xla_tuple %s4, %s5, %s6
  %s8 = sld [smem:[#allocation0]]
  $region50: #{tpu_custom_call.1} parent=0
    _
  %s10 = ssub.s32 1, %s8
  %s11 = scalar_select 0, %s10, %s8
  $region1: #{tpu_custom_call.1} parent=0
    #allocation2 [shape = 'u8[8192]{0}', space=vmem, size = 0x2000, scoped, tag = 'input window, operand 0, single buffered']
    #allocation3 [shape = 's32[1]{0}', space=sflag, size = 0x4, scoped, tag = 'scoped memory for tpu_custom_call.1']
    #allocation4 [shape = 's32[1]{0}', space=sflag, size = 0x4, scoped, tag = 'scoped memory for tpu_custom_call.1']
    #allocation5 [shape = 'u8[8192]{0}', space=vmem, size = 0x2000, scoped, tag = 'input window, operand 3, single buffered']
    #allocation6 [shape = 's32[1]{0}', space=sflag, size = 0x4, scoped, tag = 'scoped memory for tpu_custom_call.1']
    #allocation7 [shape = 'u8[4096]{0}', space=vmem, size = 0x1000, scoped, tag = 'output window, operand 0, single buffered']
    #allocation8 [shape = 'u8[4096]{0}', space=vmem, size = 0x1000, scoped, tag = 'output window, operand 1, single buffered']
    #allocation9 [shape = 's32[1]{0}', space=sflag, size = 0x4, scoped, tag = 'scoped memory for tpu_custom_call.1']
    #allocation10 [shape = 'u8[4096]{0}', space=vmem, size = 0x1000, scoped, tag = 'output window, operand 2, single buffered']
    %12 = vsyncpa [#allocation3], 0
    %13 = vsyncpa [#allocation6], 0
    %14 = vsyncpa [#allocation4], 0
    %15 = vsyncpa [#allocation9], 0
    // Predicated region
    $region2: #{tpu_custom_call.1} parent=1 // pred_check
      _
    $region3: #{tpu_custom_call.1} parent=1 // pred_check_branch
      %17 = sbr.rel (0) target = $region5
    $region4: #{tpu_custom_call.1} parent=1 // pred_region
      %s19 = ssub.s32 256, 256
      %20 = vsyncadd [#allocation3], %s19
      %s21 = sshll.u32 [#allocation2], 4
      %s22 = int_to_ptr.vmem [resolvable:$true] %s21
      %27 = dma.hbm_to_vmem [thread:$0]  %s0, 256, %s22, [#allocation3], 128, 128, 8
    $region5: #{tpu_custom_call.1} parent=1 // pred_fallthru
      _
    // Predicated region
    $region6: #{tpu_custom_call.1} parent=1 // pred_check
      _
    $region7: #{tpu_custom_call.1} parent=1 // pred_check_branch
      %29 = sbr.rel (0) target = $region9
    $region8: #{tpu_custom_call.1} parent=1 // pred_region
      _
    $region9: #{tpu_custom_call.1} parent=1 // pred_fallthru
      _
    // Predicated region
    $region10: #{tpu_custom_call.1} parent=1 // pred_check
      _
    $region11: #{tpu_custom_call.1} parent=1 // pred_check_branch
      %31 = sbr.rel (0) target = $region13
    $region12: #{tpu_custom_call.1} parent=1 // pred_region
      _
    $region13: #{tpu_custom_call.1} parent=1 // pred_fallthru
      _
    // Predicated region
    $region14: #{tpu_custom_call.1} parent=1 // pred_check
      _
    $region15: #{tpu_custom_call.1} parent=1 // pred_check_branch
      %33 = sbr.rel (0) target = $region17
    $region16: #{tpu_custom_call.1} parent=1 // pred_region
      %s35 = ssub.s32 256, 256
      %36 = vsyncadd [#allocation6], %s35
      %s37 = sshll.u32 [#allocation5], 4
      %s38 = int_to_ptr.vmem [resolvable:$true] %s37
      %43 = dma.hbm_to_vmem [thread:$0]  %s3, 256, %s38, [#allocation6], 64, 64, 4
    $region17: #{tpu_custom_call.1} parent=1 // pred_fallthru
      _
    // Predicated region
    $region18: #{tpu_custom_call.1} parent=1 // pred_check
      _
    $region19: #{tpu_custom_call.1} parent=1 // pred_check_branch
      %45 = sbr.rel (0) target = $region21
    $region20: #{tpu_custom_call.1} parent=1 // pred_region
      %46 = dma.done [#allocation3], 256
    $region21: #{tpu_custom_call.1} parent=1 // pred_fallthru
      _
    // Predicated region
    $region22: #{tpu_custom_call.1} parent=1 // pred_check
      _
    $region23: #{tpu_custom_call.1} parent=1 // pred_check_branch
      %48 = sbr.rel (0) target = $region25
    $region24: #{tpu_custom_call.1} parent=1 // pred_region
      %49 = dma.done [#allocation6], 256
    $region25: #{tpu_custom_call.1} parent=1 // pred_fallthru
      _
    %v51 = vld [vmem:[#allocation2] sm:$0xff]
    %v52 = vld [vmem:[#allocation2 + $0x8] sm:$0xff]
    %vm53 = vcmask 261120
    %v54 = vsel %vm53, %v51, 0.0
    %55 = vadd.xlane.f32.xlu0 %v54
    %v56 = vpop.xlane.xlu0 %55
    %v57 = vsel %vm53, %v52, 0.0
    %58 = vadd.xlane.f32.xlu0 %v57
    %v59 = vpop.xlane.xlu0 %58
    %v60 = vrcp.pop 32.0
    %v61 = vmul.f32 %v56, %v60
    %v62 = vmul.f32 %v59, %v60
    %v63 = vsub.f32 %v51, %v61
    %v64 = vsub.f32 %v52, %v62
    %v65 = vmul.f32 %v63, %v63
    %v66 = vmul.f32 %v64, %v64
    %v67 = vsel %vm53, %v65, 0.0
    %68 = vadd.xlane.f32.xlu0 %v67
    %v69 = vpop.xlane.xlu0 %68
    %v70 = vsel %vm53, %v66, 0.0
    %71 = vadd.xlane.f32.xlu0 %v70
    %v72 = vpop.xlane.xlu0 %71
    %v73 = vmul.f32 %v69, %v60
    %v74 = vmul.f32 %v72, %v60
    %v75 = vadd.f32 %v73, 1e-05
    %v76 = vadd.f32 %v74, 1e-05
    %v77 = vrsqrt.pop %v75
    %v78 = vrsqrt.pop %v76
    %v79 = vmul.f32 %v63, %v77
    %v80 = vmul.f32 %v64, %v78
    %v81 = vld [vmem:[%s1] sm:$0x1]
    %v83 = vlaneseq
    %v84 = vshrl.u32 %v83, 7
    %v85 = vsub.s32 0, %v84
    %v86 = vrot.slane %v81, %v85
    %v88 = vmul.f32 %v79, %v86
    %v89 = vmul.f32 %v80, %v86
    %v90 = vld [vmem:[%s2] sm:$0x1]
    %v92 = vlaneseq
    %v93 = vshrl.u32 %v92, 7
    %v94 = vsub.s32 0, %v93
    %v95 = vrot.slane %v90, %v94
    %v97 = vadd.f32 %v88, %v95
    %v98 = vadd.f32 %v89, %v95
    %v99 = vpack.c.bf16 %v98, %v97
    %v100 = vld [vmem:[#allocation5] sm:$0xf]
    %v101 = vld [vmem:[#allocation5 + $0x4] sm:$0xf]
    %v102 = vld [vmem:[#allocation5 + $0x8] sm:$0xf]
    %v103 = vld [vmem:[#allocation5 + $0xc] sm:$0xf]
    %v108 = vunpack.c.l.b16 %v100
    %v109 = vunpack.c.l.b16 %v101
    %v110 = vunpack.c.l.b16 %v102
    %v111 = vunpack.c.l.b16 %v103
    %v112 = vpack.c.b16 %v109, %v108
    %v113 = vpack.c.b16 %v111, %v110
    %v117 = vsel %vm53, %v99, 0
    %119 = vmatprep.subr.bf16.mxu0 0
    %120 = vmatpush1.bf16.msra.mxu0 %v112
    %121 = vmatprep.subr.bf16.mxu0 0
    %122 = vmatpush1.bf16.msra.mxu0 %v113
    %123 = vmatprep.subr.bf16.mxu0 0
    %124 = vmatpush1.bf16.msra.mxu0 0
    %125 = vmatprep.subr.bf16.mxu0 0
    %126 = vmatpush1.bf16.msra.mxu0 0
    %127 = vmatprep.subr.bf16.mxu0 0
    %128 = vmatpush1.bf16.msra.mxu0 0
    %129 = vmatprep.subr.bf16.mxu0 0
    %130 = vmatpush1.bf16.msra.mxu0 0
    %131 = vmatprep.subr.bf16.mxu0 0
    %132 = vmatpush1.bf16.msra.mxu0 0
    %133 = vmatprep.subr.bf16.mxu0 0
    %134 = vmatpush1.bf16.msra.mxu0 0
    %135 = vmatprep.subr.bf16.mxu0 0
    %136 = vmatpush1.bf16.msra.mxu0 0
    %137 = vmatprep.subr.bf16.mxu0 0
    %138 = vmatpush1.bf16.msra.mxu0 0
    %139 = vmatprep.subr.bf16.mxu0 0
    %140 = vmatpush1.bf16.msra.mxu0 0
    %141 = vmatprep.subr.bf16.mxu0 0
    %142 = vmatpush1.bf16.msra.mxu0 0
    %143 = vmatprep.subr.bf16.mxu0 0
    %144 = vmatpush1.bf16.msra.mxu0 0
    %145 = vmatprep.subr.bf16.mxu0 0
    %146 = vmatpush1.bf16.msra.mxu0 0
    %147 = vmatprep.subr.bf16.mxu0 0
    %148 = vmatpush1.bf16.msra.mxu0 0
    %149 = vmatprep.subr.bf16.mxu0 0
    %150 = vmatpush1.bf16.msra.mxu0 0
    %151 = vmatprep.mubr.bf16.mxu0 0
    %152 = vmatmul.mubr.bf16.gmra.mrb[0].mxu0 %v117
    %v153 = vpop.f32.mrb[0].mxu0
    %v154 = vadd.f32 0.0, %v153
    %v155 = vpop.f32.mrb[0].mxu0
    %v156 = vpop.f32.mrb[0].mxu0
    %v157 = vadd.f32 0.0, %v156
    %v158 = vpop.f32.mrb[0].mxu0
    %159 = vdwg.mxu0
    %v160 = vpack.c.bf16 %v157, %v154
    %v162 = vunpack.c.l.b16 %v160
    %v163 = vunpack.c.h.b16 %v160
    %v164 = vpack.c.b16 %v162, %v162
    %v165 = vpack.c.b16 %v163, %v163
    %vm168 = vcmask 257024
    %169 = vst.msk [vmem:[#allocation7] sm:$0xf] %vm168, %v164
    %170 = vst.msk [vmem:[#allocation7 + $0x4] sm:$0xf] %vm168, %v165
    %171 = vrot.lane.b32.xlu0 %v164, 96
    %v172 = vpop.permute.xlu0 %171
    %173 = vrot.lane.b32.xlu0 %v165, 96
    %v174 = vpop.permute.xlu0 %173
    %177 = vst.msk [vmem:[#allocation8] sm:$0xf] %vm168, %v172
    %178 = vst.msk [vmem:[#allocation8 + $0x4] sm:$0xf] %vm168, %v174
    %179 = vrot.lane.b32.xlu0 %v164, 64
    %v180 = vpop.permute.xlu0 %179
    %181 = vrot.lane.b32.xlu0 %v165, 64
    %v182 = vpop.permute.xlu0 %181
    %185 = vst.msk [vmem:[#allocation10] sm:$0xf] %vm168, %v180
    %186 = vst.msk [vmem:[#allocation10 + $0x4] sm:$0xf] %vm168, %v182
    // Predicated region
    $region26: #{tpu_custom_call.1} parent=1 // pred_check
      _
    $region27: #{tpu_custom_call.1} parent=1 // pred_check_branch
      %188 = sbr.rel (0) target = $region29
    $region28: #{tpu_custom_call.1} parent=1 // pred_region
      %s190 = ssub.s32 128, 128
      %191 = vsyncadd [#allocation4], %s190
      %s192 = sshll.u32 [#allocation7], 4
      %s193 = int_to_ptr.vmem [resolvable:$true] %s192
      %198 = dma.vmem_to_hbm [thread:$0]  %s193, 128, %s4, [#allocation4], 64, 64, 4
    $region29: #{tpu_custom_call.1} parent=1 // pred_fallthru
      _
    // Predicated region
    $region30: #{tpu_custom_call.1} parent=1 // pred_check
      _
    $region31: #{tpu_custom_call.1} parent=1 // pred_check_branch
      %200 = sbr.rel (0) target = $region33
    $region32: #{tpu_custom_call.1} parent=1 // pred_region
      %s202 = ssub.s32 128, 128
      %203 = vsyncadd [#allocation9], %s202
      %s204 = sshll.u32 [#allocation8], 4
      %s205 = int_to_ptr.vmem [resolvable:$true] %s204
      %210 = dma.vmem_to_hbm [thread:$0]  %s205, 128, %s5, [#allocation9], 64, 64, 4
    $region33: #{tpu_custom_call.1} parent=1 // pred_fallthru
      _
    // Predicated region
    $region34: #{tpu_custom_call.1} parent=1 // pred_check
      _
    $region35: #{tpu_custom_call.1} parent=1 // pred_check_branch
      %212 = sbr.rel (0) target = $region37
    $region36: #{tpu_custom_call.1} parent=1 // pred_region
      %s214 = ssub.s32 128, 128
      %215 = vsyncadd [#allocation9], %s214
      %s216 = sshll.u32 [#allocation10], 4
      %s217 = int_to_ptr.vmem [resolvable:$true] %s216
      %222 = dma.vmem_to_hbm [thread:$0]  %s217, 128, %s6, [#allocation9], 64, 64, 4
    $region37: #{tpu_custom_call.1} parent=1 // pred_fallthru
      _
    // Predicated region
    $region38: #{tpu_custom_call.1} parent=1 // pred_check
      _
    $region39: #{tpu_custom_call.1} parent=1 // pred_check_branch
      %224 = sbr.rel (0) target = $region41
    $region40: #{tpu_custom_call.1} parent=1 // pred_region
      %225 = dma.done [#allocation4], 128
    $region41: #{tpu_custom_call.1} parent=1 // pred_fallthru
      _
    // Predicated region
    $region42: #{tpu_custom_call.1} parent=1 // pred_check
      _
    $region43: #{tpu_custom_call.1} parent=1 // pred_check_branch
      %227 = sbr.rel (0) target = $region45
    $region44: #{tpu_custom_call.1} parent=1 // pred_region
      %228 = dma.done [#allocation9], 128
    $region45: #{tpu_custom_call.1} parent=1 // pred_fallthru
      _
    // Predicated region
    $region46: #{tpu_custom_call.1} parent=1 // pred_check
      _
    $region47: #{tpu_custom_call.1} parent=1 // pred_check_branch
      %230 = sbr.rel (0) target = $region49
    $region48: #{tpu_custom_call.1} parent=1 // pred_region
      %231 = dma.done [#allocation9], 128
    $region49: #{tpu_custom_call.1} parent=1 // pred_fallthru
      _
    %232 = vsyncpa [#allocation3], 1
    %233 = vsyncpa [#allocation6], 1
    %234 = vsyncpa [#allocation4], 1
    %235 = vsyncpa [#allocation9], 1

</llo_original>
